<compile_context>
chip_gen: v5e
topology: v5e:2x2
jax: 0.10.0
libtpu: 0.0.40
codegen_flags: <defaults>
</compile_context>

<pallas_src>
import functools

import jax
import jax.numpy as jnp
from jax.experimental import pallas as pl
from jax.experimental.pallas import tpu as pltpu


def _round_up(x, m):
    return (x + m - 1) // m * m


def _choose_tiles(n_p, in_p, out_p, out_bytes, batch, budget_bytes):
    """Largest (tm, tk) whose double-buffered VMEM footprint fits the budget."""

    def est(tm, tk):
        return (
            2 * tm * tk * 2            # adj tiles (bf16, double-buffered)
            + 2 * tk * in_p * 2        # feature tiles (bf16)
            + 2 * in_p * out_p * 2     # resident weight (bf16)
            + 2 * out_p * 4            # resident bias (f32)
            + 2 * tm * out_p * out_bytes  # output tile
            + tm * out_p * 4           # f32 accumulator (worst case)
        )

    for tm in (512, 256, 128):
        if n_p % tm:
            continue
        # Keep >= 2 row tiles when B == 1 so v7x's 2 TensorCores both get work.
        if batch == 1 and n_p > 128 and n_p // tm < 2:
            continue
        for tk in (1024, 512, 256, 128):
            if n_p % tk:
                continue
            if est(tm, tk) <= budget_bytes:
                return tm, tk, est(tm, tk)
    # TODO(synk): tile W over in_p if a huge in_dim*out_dim weight ever
    # overflows VMEM; GNN layer dims are small so the resident W always fits.
    return 128, 128, est(128, 128)


# ---------------------------------------------------------------------------
# Fused kernel:   out[b, m-tile] = sum_k  adj[b, m-tile, k-tile] @
#                                         (features[b, k-tile] @ W)    + bias
# grid = (B, row_tiles, k_tiles); k innermost ("arbitrary") reduction.
# ---------------------------------------------------------------------------
def _gnn_fused_f32_kernel(adj_ref, feat_ref, w_ref, bias_ref, out_ref):
    """f32 output: accumulate directly into the resident output block."""
    k = pl.program_id(2)

    @pl.when(k == 0)
    def _():
        out_ref[0] = jnp.broadcast_to(bias_ref[...], out_ref.shape[1:])

    sup = jnp.dot(
        feat_ref[0], w_ref[...], preferred_element_type=jnp.float32
    ).astype(feat_ref.dtype)
    out_ref[0] += jnp.dot(adj_ref[0], sup, preferred_element_type=jnp.float32)


def _gnn_fused_acc_kernel(adj_ref, feat_ref, w_ref, bias_ref, out_ref, acc_ref):
    """Generic output dtype: f32 VMEM accumulator, finalized on the last k step."""
    k = pl.program_id(2)

    @pl.when(k == 0)
    def _():
        acc_ref[...] = jnp.zeros_like(acc_ref)

    sup = jnp.dot(
        feat_ref[0], w_ref[...], preferred_element_type=jnp.float32
    ).astype(feat_ref.dtype)
    acc_ref[...] += jnp.dot(adj_ref[0], sup, preferred_element_type=jnp.float32)

    @pl.when(k == pl.num_programs(2) - 1)
    def _():
        out_ref[0] = (acc_ref[...] + bias_ref[...]).astype(out_ref.dtype)


@functools.partial(jax.jit, static_argnames=("compute_dtype",))
def gnn_layer(features, adj, weight, bias, *, compute_dtype=jnp.bfloat16):
    """out = bmm(adj, features @ weight) + bias   (matches GNNLayer.forward)."""
    B, N, in_dim = features.shape
    out_dim = weight.shape[1]
    out_dtype = features.dtype
    out_bytes = jnp.dtype(out_dtype).itemsize

    # Lane/sublane-friendly padded sizes (zero padding keeps the math exact).
    in_p = _round_up(in_dim, 128)
    out_p = _round_up(out_dim, 128)
    n_p = _round_up(N, 128)

    # MXU inputs in compute_dtype (bf16 by default); both dots accumulate in
    # f32 via preferred_element_type.  Cast BEFORE padding so the pad ops move
    # half the bytes.
    feats_c = features.astype(compute_dtype)
    adj_c = adj.astype(compute_dtype)
    w_c = weight.astype(compute_dtype)
    bias_f = bias.astype(jnp.float32).reshape(1, out_dim)

    # Only materialize pads when actually needed: padding adj costs a full
    # extra HBM pass over B*N^2 elements, so skip it when N is aligned.
    if n_p != N or in_p != in_dim:
        feats_c = (
            jnp.zeros((B, n_p, in_p), compute_dtype).at[:, :N, :in_dim].set(feats_c)
        )
    if n_p != N:
        adj_c = jnp.zeros((B, n_p, n_p), compute_dtype).at[:, :N, :N].set(adj_c)
    if in_p != in_dim or out_p != out_dim:
        w_c = (
            jnp.zeros((in_p, out_p), compute_dtype).at[:in_dim, :out_dim].set(w_c)
        )
    if out_p != out_dim:
        bias_f = jnp.zeros((1, out_p), jnp.float32).at[:, :out_dim].set(bias_f)

    # Tile selection against an explicit VMEM budget (safe on v7x's 64 MiB).
    budget = 40 * 1024 * 1024
    tm, tk, est = _choose_tiles(n_p, in_p, out_p, out_bytes, B, budget)
    vmem_limit = min(max(2 * est, 32 * 1024 * 1024), 48 * 1024 * 1024)

    cbytes = jnp.dtype(compute_dtype).itemsize
    m_tiles = n_p // tm
    cost = pl.CostEstimate(
        flops=2 * B * n_p * n_p * out_p              # adj bmm
        + 2 * B * m_tiles * n_p * in_p * out_p,      # fused projection (recomputed per row tile)
        transcendentals=0,
        bytes_accessed=(
            B * n_p * n_p * cbytes                   # adj, read once
            + B * m_tiles * n_p * in_p * cbytes      # features, re-read per row tile
            + in_p * out_p * cbytes                  # resident W
            + out_p * 4                              # bias
            + B * n_p * out_p * out_bytes            # output write
        ),
    )

    direct = out_dtype == jnp.float32
    kernel = _gnn_fused_f32_kernel if direct else _gnn_fused_acc_kernel
    scratch = [] if direct else [pltpu.VMEM((tm, out_p), jnp.float32)]

    out_padded = pl.pallas_call(
        kernel,
        out_shape=jax.ShapeDtypeStruct((B, n_p, out_p), out_dtype),
        grid_spec=pltpu.PrefetchScalarGridSpec(
            num_scalar_prefetch=0,
            grid=(B, n_p // tm, n_p // tk),
            in_specs=[
                pl.BlockSpec((1, tm, tk), lambda b, m, k: (b, m, k)),    # adj tile
                pl.BlockSpec((1, tk, in_p), lambda b, m, k: (b, k, 0)),  # feature tile
                pl.BlockSpec((in_p, out_p), lambda b, m, k: (0, 0)),     # resident W
                pl.BlockSpec((1, out_p), lambda b, m, k: (0, 0)),        # resident bias
            ],
            out_specs=pl.BlockSpec((1, tm, out_p), lambda b, m, k: (b, m, 0)),
            scratch_shapes=scratch,
        ),
        compiler_params=pltpu.CompilerParams(
            dimension_semantics=("parallel", "parallel", "arbitrary"),
            vmem_limit_bytes=vmem_limit,
        ),
        cost_estimate=cost,
    )(adj_c, feats_c, w_c, bias_f)

    if n_p != N or out_p != out_dim:
        return out_padded[:, :N, :out_dim]
    return out_padded


def init_gnn_params(key, in_dim, out_dim, dtype=jnp.float32):
    """Mirrors GNNLayer.reset_parameters: U(-stdv, stdv), stdv = 1/sqrt(out_dim)."""
    stdv = 1.0 / jnp.sqrt(jnp.asarray(out_dim, dtype=jnp.float32))
    kw, kb = jax.random.split(key)
    weight = jax.random.uniform(
        kw, (in_dim, out_dim), dtype=dtype, minval=-stdv, maxval=stdv
    )
    bias = jax.random.uniform(kb, (out_dim,), dtype=dtype, minval=-stdv, maxval=stdv)
    return weight, bias


if __name__ == "__main__":
    key = jax.random.PRNGKey(0)
    B, N, in_dim, out_dim = 2, 8, 32, 32

    k_feat, k_adj, k_par = jax.random.split(key, 3)
    features = jax.random.normal(k_feat, (B, N, in_dim), dtype=jnp.float32)
    # row-normalized dense adjacency (any dense matrix works semantically)
    adj_raw = jax.random.uniform(k_adj, (B, N, N), dtype=jnp.float32)
    adj = adj_raw / jnp.sum(adj_raw, axis=-1, keepdims=True)

    weight, bias = init_gnn_params(k_par, in_dim, out_dim)

    # default bf16-MXU path
    out = gnn_layer(features, adj, weight, bias)
    out = jax.block_until_ready(out)

    ref = jnp.einsum("bnm,bmd->bnd", adj, features @ weight) + bias
    assert out.shape == (B, N, out_dim)
    # bf16 MXU inputs with f32 accumulation -> loosened tolerance vs f32 ref
    assert jnp.allclose(out, ref, atol=3e-2, rtol=3e-2)

    # exact (f32 compute) path sanity check
    out_f32 = gnn_layer(features, adj, weight, bias, compute_dtype=jnp.float32)
    out_f32 = jax.block_until_ready(out_f32)
    assert jnp.allclose(out_f32, ref, atol=1e-5, rtol=1e-5)

    print("KERNEL_OK")
</pallas_src>

<mosaic_0001>
module attributes {stable_mosaic.version = 11 : i64} {
  func.func @_gnn_fused_f32_kernel(%arg0: i32, %arg1: i32, %arg2: i32, %arg3: memref<1x128x128xbf16, #tpu.memory_space<vmem>>, %arg4: memref<1x128x128xbf16, #tpu.memory_space<vmem>>, %arg5: memref<128x128xbf16, #tpu.memory_space<vmem>>, %arg6: memref<1x128xf32, #tpu.memory_space<vmem>>, %arg7: memref<1x128x128xf32, #tpu.memory_space<vmem>>) attributes {dimension_semantics = [#tpu.dimension_semantics<parallel>, #tpu.dimension_semantics<parallel>, #tpu.dimension_semantics<arbitrary>], iteration_bounds = array<i64: 2, 1, 1>, scalar_prefetch = 0 : i64, scratch_operands = 0 : i64, tpu.core_type = #tpu.core_type<tc>, window_params = [{transform_indices = @transform_0, window_bounds = array<i64: 1, 128, 128>}, {transform_indices = @transform_1, window_bounds = array<i64: 1, 128, 128>}, {pipeline_mode = #tpu.pipeline_mode<synchronous>, transform_indices = @transform_2, window_bounds = array<i64: 128, 128>}, {pipeline_mode = #tpu.pipeline_mode<synchronous>, transform_indices = @transform_3, window_bounds = array<i64: 1, 128>}, {transform_indices = @transform_4, window_bounds = array<i64: 1, 128, 128>}]} {
    %c0_i32 = arith.constant 0 : i32
    %0 = arith.cmpi eq, %arg2, %c0_i32 : i32
    %1 = arith.extui %0 : i1 to i32
    %c0_i32_0 = arith.constant 0 : i32
    %2 = arith.cmpi ne, %1, %c0_i32_0 : i32
    scf.if %2 {
      %c0_15 = arith.constant 0 : index
      %c0_16 = arith.constant 0 : index
      %17 = vector.load %arg6[%c0_15, %c0_16] : memref<1x128xf32, #tpu.memory_space<vmem>>, vector<1x128xf32>
      %18 = vector.shape_cast %17 : vector<1x128xf32> to vector<1x128xf32>
      %19 = vector.broadcast %18 : vector<1x128xf32> to vector<128x128xf32>
      %c0_17 = arith.constant 0 : index
      %c0_18 = arith.constant 0 : index
      %c0_19 = arith.constant 0 : index
      %20 = vector.load %arg7[%c0_17, %c0_18, %c0_19] : memref<1x128x128xf32, #tpu.memory_space<vmem>>, vector<1x128x128xf32>
      %21 = vector.shape_cast %20 : vector<1x128x128xf32> to vector<128x128xf32>
      %22 = vector.shape_cast %19 : vector<128x128xf32> to vector<1x128x128xf32>
      tpu.vector_store %arg7[%c0_17, %c0_18, %c0_19], %22 {strides = array<i32>} : memref<1x128x128xf32, #tpu.memory_space<vmem>>, vector<1x128x128xf32>,
    } else {
    }
    %c0 = arith.constant 0 : index
    %c0_1 = arith.constant 0 : index
    %c0_2 = arith.constant 0 : index
    %3 = vector.load %arg4[%c0, %c0_1, %c0_2] : memref<1x128x128xbf16, #tpu.memory_space<vmem>>, vector<1x128x128xbf16>
    %4 = vector.shape_cast %3 : vector<1x128x128xbf16> to vector<128x128xbf16>
    %c0_3 = arith.constant 0 : index
    %c0_4 = arith.constant 0 : index
    %5 = vector.load %arg5[%c0_3, %c0_4] : memref<128x128xbf16, #tpu.memory_space<vmem>>, vector<128x128xbf16>
    %cst = arith.constant dense<0.000000e+00> : vector<128x128xf32>
    %6 = tpu.matmul %4, %5, %cst {dimension_numbers = #tpu.dot_dimension_numbers<[1], [0], [0], [1], [0, 0, 1, 1], [], []>} : vector<128x128xbf16>, vector<128x128xbf16>, vector<128x128xf32> -> vector<128x128xf32>
    %7 = arith.truncf %6 : vector<128x128xf32> to vector<128x128xbf16>
    %c0_5 = arith.constant 0 : index
    %c0_6 = arith.constant 0 : index
    %c0_7 = arith.constant 0 : index
    %8 = vector.load %arg7[%c0_5, %c0_6, %c0_7] : memref<1x128x128xf32, #tpu.memory_space<vmem>>, vector<1x128x128xf32>
    %9 = vector.shape_cast %8 : vector<1x128x128xf32> to vector<128x128xf32>
    %c0_8 = arith.constant 0 : index
    %c0_9 = arith.constant 0 : index
    %c0_10 = arith.constant 0 : index
    %10 = vector.load %arg3[%c0_8, %c0_9, %c0_10] : memref<1x128x128xbf16, #tpu.memory_space<vmem>>, vector<1x128x128xbf16>
    %11 = vector.shape_cast %10 : vector<1x128x128xbf16> to vector<128x128xbf16>
    %cst_11 = arith.constant dense<0.000000e+00> : vector<128x128xf32>
    %12 = tpu.matmul %11, %7, %cst_11 {dimension_numbers = #tpu.dot_dimension_numbers<[1], [0], [0], [1], [0, 0, 1, 1], [], []>} : vector<128x128xbf16>, vector<128x128xbf16>, vector<128x128xf32> -> vector<128x128xf32>
    %13 = arith.addf %9, %12 : vector<128x128xf32>
    %c0_12 = arith.constant 0 : index
    %c0_13 = arith.constant 0 : index
    %c0_14 = arith.constant 0 : index
    %14 = vector.load %arg7[%c0_12, %c0_13, %c0_14] : memref<1x128x128xf32, #tpu.memory_space<vmem>>, vector<1x128x128xf32>
    %15 = vector.shape_cast %14 : vector<1x128x128xf32> to vector<128x128xf32>
    %16 = vector.shape_cast %13 : vector<128x128xf32> to vector<1x128x128xf32>
    tpu.vector_store %arg7[%c0_12, %c0_13, %c0_14], %16 {strides = array<i32>} : memref<1x128x128xf32, #tpu.memory_space<vmem>>, vector<1x128x128xf32>,
    return
  }
  func.func @transform_0(%arg0: i32, %arg1: i32, %arg2: i32) -> (i32, i32, i32) {
    %c0_i32 = arith.constant 0 : i32
    return %arg0, %arg1, %arg2 : i32, i32, i32
  }
  func.func @transform_1(%arg0: i32, %arg1: i32, %arg2: i32) -> (i32, i32, i32) {
    %c0_i32 = arith.constant 0 : i32
    %c0_i32_0 = arith.constant 0 : i32
    return %arg0, %arg2, %c0_i32 : i32, i32, i32
  }
  func.func @transform_2(%arg0: i32, %arg1: i32, %arg2: i32) -> (i32, i32) {
    %c0_i32 = arith.constant 0 : i32
    %c0_i32_0 = arith.constant 0 : i32
    %c0_i32_1 = arith.constant 0 : i32
    return %c0_i32, %c0_i32_0 : i32, i32
  }
  func.func @transform_3(%arg0: i32, %arg1: i32, %arg2: i32) -> (i32, i32) {
    %c0_i32 = arith.constant 0 : i32
    %c0_i32_0 = arith.constant 0 : i32
    %c0_i32_1 = arith.constant 0 : i32
    return %c0_i32, %c0_i32_0 : i32, i32
  }
  func.func @transform_4(%arg0: i32, %arg1: i32, %arg2: i32) -> (i32, i32, i32) {
    %c0_i32 = arith.constant 0 : i32
    %c0_i32_0 = arith.constant 0 : i32
    return %arg0, %arg1, %c0_i32 : i32, i32, i32
  }
}

</mosaic_0001>

<llo_original>
// kernel: gnn_layer.1
$region0: #{gnn_layer.1}
  #allocation0 [shape = 'u32[]', space=smem, size = 0x4, offset = 0x4, fixed_abs, tag = 'smem constant byte address 0x4 - core index']
  #allocation1 [shape = 'u32[72,128]{1,0:T(1,128)}', space=vmem, size = 0x9000, scoped, tag = 'internal scratch']
  %s0 = inlined_call_operand.vmem [shape: bf16[2,128,128], index: 0, kind: input, shape index: {}]
  %s1 = inlined_call_operand.vmem [shape: bf16[2,128,128], index: 1, kind: input, shape index: {}]
  %s2 = inlined_call_operand.vmem [shape: bf16[128,128], index: 2, kind: input, shape index: {}]
  %s3 = inlined_call_operand.vmem [shape: f32[1,128], index: 3, kind: input, shape index: {}]
  %s4 = inlined_call_operand.vmem [shape: f32[2,128,128], index: 4, kind: output, shape index: {}]
  %s5 = sld [smem:[#allocation0]]
  $region53: #{gnn_layer.1} parent=0
    _
  %s7 = ssub.s32 1, %s5
  %s8 = scalar_select 0, %s7, %s5
  loop: start=0, step=1, limit=4
  $region2: #{gnn_layer.1} parent=0 // loop_pre_header
    _
  $region3: #{gnn_layer.1} parent=0 // loop_header
    %s10 = sphi 0, %s14
    %p11 = scmp.ge.s32.totalorder %s10, 4
    %s17 = sphi 0, %s36
    %s18 = sphi 0, %s32
    %s19 = sphi 0, %s28
    %s20 = sphi 0, %s17
    %s21 = sphi 0, %s18
    %s22 = sphi 0, %s19
    %s23 = sphi 0, %s20
    %s24 = sphi 0, %s21
    %s25 = sphi 0, %s22
    %s43 = sphi 0, %s45
    %s46 = sphi 0, %s43
    %s47 = sphi 0, %s46
    %s63 = sphi 0, %s47
    %s71 = sphi 0, %s73
    %s74 = sphi 0, %s71
    %s75 = sphi 0, %s74
    %s91 = sphi 0, %s75
    %s95 = sphi 0, %s95
    %s97 = sphi 0, %s95
    %s98 = sphi 0, %s97
    %s112 = sphi 0, %s98
    %s116 = sphi 0, %s116
    %s118 = sphi 0, %s116
    %s119 = sphi 0, %s118
    %s133 = sphi 0, %s119
    %s141 = sphi 0, %s143
    %s144 = sphi 0, %s141
    %s145 = sphi 0, %s144
    %s161 = sphi 0, %s145
  $region4: #{gnn_layer.1} parent=0 // loop_header_branch
    %13 = sbr.rel (%p11) target = $region8
  $region5: #{gnn_layer.1} parent=0 // loop_body
    %s15 = ssub.s32 %s10, 1
    %s16 = ssub.s32 %s10, 2
    %s26 = sadd.s32 1, %s19
    %p27 = scmp.ge.s32.totalorder %s26, 1
    %s28 = scalar_select %p27, 0, %s26
    %s29 = sadd.s32 1, %s18
    %s30 = scalar_select %p27, %s29, %s18
    %p31 = scmp.ge.s32.totalorder %s30, 1
    %s32 = scalar_select %p31, 0, %s30
    %s33 = sadd.s32 1, %s17
    %s34 = scalar_select %p31, %s33, %s17
    %p35 = scmp.ge.s32.totalorder %s34, 2
    %s36 = scalar_select %p35, 0, %s34
    %s37 = ssub.s32 %s17, %s36
    %s38 = ssub.s32 %s18, %s32
    %s39 = sor.u32 %s37, %s38
    %s40 = ssub.s32 %s19, %s28
    %s41 = sor.u32 %s39, %s40
    %p42 = scmp.eq.s32.totalorder %s41, 0
    %s44 = sadd.s32 %s43, 1
    %s45 = scalar_select %p42, %s43, %s44
    %p48 = pneg %p42
    %p49 = scmp.eq.s32.totalorder %s10, 1
    %p50 = por %p48, %p49
    %p51 = scmp.ne.s32.totalorder %s43, %s46
    %p52 = scmp.eq.s32.totalorder %s10, 0
    %p53 = por %p51, %p52
    %p54 = scmp.ne.s32.totalorder %s43, %s46
    %p55 = scmp.eq.s32.totalorder %s15, 1
    %p56 = por %p54, %p55
    %p57 = scmp.ne.s32.totalorder %s46, %s47
    %p58 = scmp.eq.s32.totalorder %s15, 0
    %p59 = por %p57, %p58
    %p60 = scmp.ne.s32.totalorder %s46, %s47
    %p61 = scmp.eq.s32.totalorder %s16, 1
    %p62 = por %p60, %p61
    %p64 = scmp.ne.s32.totalorder %s47, %s63
    %p65 = scmp.eq.s32.totalorder %s16, 0
    %p66 = por %p64, %p65
    %s67 = ssub.s32 %s17, %s36
    %s68 = ssub.s32 %s19, %s28
    %s69 = sor.u32 %s67, %s68
    %p70 = scmp.eq.s32.totalorder %s69, 0
    %s72 = sadd.s32 %s71, 1
    %s73 = scalar_select %p70, %s71, %s72
    %p76 = pneg %p70
    %p77 = scmp.eq.s32.totalorder %s10, 1
    %p78 = por %p76, %p77
    %p79 = scmp.ne.s32.totalorder %s71, %s74
    %p80 = scmp.eq.s32.totalorder %s10, 0
    %p81 = por %p79, %p80
    %p82 = scmp.ne.s32.totalorder %s71, %s74
    %p83 = scmp.eq.s32.totalorder %s15, 1
    %p84 = por %p82, %p83
    %p85 = scmp.ne.s32.totalorder %s74, %s75
    %p86 = scmp.eq.s32.totalorder %s15, 0
    %p87 = por %p85, %p86
    %p88 = scmp.ne.s32.totalorder %s74, %s75
    %p89 = scmp.eq.s32.totalorder %s16, 1
    %p90 = por %p88, %p89
    %p92 = scmp.ne.s32.totalorder %s75, %s91
    %p93 = scmp.eq.s32.totalorder %s16, 0
    %p94 = por %p92, %p93
    %s96 = sadd.s32 %s95, 1
    %p99 = scmp.eq.s32.totalorder %s10, 1
    %p100 = scmp.ne.s32.totalorder %s95, %s97
    %p101 = scmp.eq.s32.totalorder %s10, 0
    %p102 = por %p100, %p101
    %p103 = scmp.ne.s32.totalorder %s95, %s97
    %p104 = scmp.eq.s32.totalorder %s15, 1
    %p105 = por %p103, %p104
    %p106 = scmp.ne.s32.totalorder %s97, %s98
    %p107 = scmp.eq.s32.totalorder %s15, 0
    %p108 = por %p106, %p107
    %p109 = scmp.ne.s32.totalorder %s97, %s98
    %p110 = scmp.eq.s32.totalorder %s16, 1
    %p111 = por %p109, %p110
    %p113 = scmp.ne.s32.totalorder %s98, %s112
    %p114 = scmp.eq.s32.totalorder %s16, 0
    %p115 = por %p113, %p114
    %s117 = sadd.s32 %s116, 1
    %p120 = scmp.eq.s32.totalorder %s10, 1
    %p121 = scmp.ne.s32.totalorder %s116, %s118
    %p122 = scmp.eq.s32.totalorder %s10, 0
    %p123 = por %p121, %p122
    %p124 = scmp.ne.s32.totalorder %s116, %s118
    %p125 = scmp.eq.s32.totalorder %s15, 1
    %p126 = por %p124, %p125
    %p127 = scmp.ne.s32.totalorder %s118, %s119
    %p128 = scmp.eq.s32.totalorder %s15, 0
    %p129 = por %p127, %p128
    %p130 = scmp.ne.s32.totalorder %s118, %s119
    %p131 = scmp.eq.s32.totalorder %s16, 1
    %p132 = por %p130, %p131
    %p134 = scmp.ne.s32.totalorder %s119, %s133
    %p135 = scmp.eq.s32.totalorder %s16, 0
    %p136 = por %p134, %p135
    %s137 = ssub.s32 %s17, %s36
    %s138 = ssub.s32 %s18, %s32
    %s139 = sor.u32 %s137, %s138
    %p140 = scmp.eq.s32.totalorder %s139, 0
    %s142 = sadd.s32 %s141, 1
    %s143 = scalar_select %p140, %s141, %s142
    %p146 = pneg %p140
    %p147 = scmp.eq.s32.totalorder %s10, 1
    %p148 = por %p146, %p147
    %p149 = scmp.ne.s32.totalorder %s141, %s144
    %p150 = scmp.eq.s32.totalorder %s10, 0
    %p151 = por %p149, %p150
    %p152 = scmp.ne.s32.totalorder %s141, %s144
    %p153 = scmp.eq.s32.totalorder %s15, 1
    %p154 = por %p152, %p153
    %p155 = scmp.ne.s32.totalorder %s144, %s145
    %p156 = scmp.eq.s32.totalorder %s15, 0
    %p157 = por %p155, %p156
    %p158 = scmp.ne.s32.totalorder %s144, %s145
    %p159 = scmp.eq.s32.totalorder %s16, 1
    %p160 = por %p158, %p159
    %p162 = scmp.ne.s32.totalorder %s145, %s161
    %p163 = scmp.eq.s32.totalorder %s16, 0
    %p164 = por %p162, %p163
    %p165 = scmp.le.s32.totalorder 1, %s10
    %p166 = scmp.lt.s32.totalorder %s10, 3
    %p167 = pnand %p165, %p166
    %p168 = pneg %p167
    // Predicated region
    $region9: #{gnn_layer.1} parent=5 // pred_check
      _
    $region10: #{gnn_layer.1} parent=5 // pred_check_branch
      %170 = sbr.rel (%p167) target = $region12
    $region11: #{gnn_layer.1} parent=5 // pred_region
      %s171 = ssub.s32 %s10, 1
      // Predicated region
      $region13: #{gnn_layer.1} parent=11 // pred_check
        %p172 = pneg %p108
      $region14: #{gnn_layer.1} parent=11 // pred_check_branch
        %174 = sbr.rel (%p172) target = $region16
      $region15: #{gnn_layer.1} parent=11 // pred_region
        _
      $region16: #{gnn_layer.1} parent=11 // pred_fallthru
        _
      // Predicated region
      $region17: #{gnn_layer.1} parent=11 // pred_check
        %p175 = pneg %p129
      $region18: #{gnn_layer.1} parent=11 // pred_check_branch
        %177 = sbr.rel (%p175) target = $region20
      $region19: #{gnn_layer.1} parent=11 // pred_region
        _
      $region20: #{gnn_layer.1} parent=11 // pred_fallthru
        _
    $region12: #{gnn_layer.1} parent=5 // pred_fallthru
      _
    %p178 = scmp.lt.s32.totalorder %s10, 2
    // Predicated region
    $region21: #{gnn_layer.1} parent=5 // pred_check
      %p179 = pneg %p178
    $region22: #{gnn_layer.1} parent=5 // pred_check_branch
      %181 = sbr.rel (%p179) target = $region24
    $region23: #{gnn_layer.1} parent=5 // pred_region
      // Predicated region
      $region25: #{gnn_layer.1} parent=23 // pred_check
        %p182 = pneg %p53
      $region26: #{gnn_layer.1} parent=23 // pred_check_branch
        %184 = sbr.rel (%p182) target = $region28
      $region27: #{gnn_layer.1} parent=23 // pred_region
        %s185 = smul.u32 16, %s18
        %p186 = scmp.lt.s32.totalorder %s17, 1
        %s187 = scalar_select %p186, %s17, 1
        %p188 = scmp.lt.s32.totalorder %s185, 15
        %s189 = scalar_select %p188, %s185, 15
        %p190 = scmp.lt.s32.totalorder %s19, 0
        %s191 = scalar_select %p190, %s19, 0
        %s192 = sadd.s32 %s191, %s189
        %s193 = smul.addr %s187, 16
        %s194 = sadd.s32 %s192, %s193
        %s195 = smul.addr %s194, 4
        %s196 = scalar_lea.vmem %s0, %s195
        %s197 = smul.u32 16, %s18
      $region28: #{gnn_layer.1} parent=23 // pred_fallthru
        _
      // Predicated region
      $region29: #{gnn_layer.1} parent=23 // pred_check
        %p198 = pneg %p81
      $region30: #{gnn_layer.1} parent=23 // pred_check_branch
        %200 = sbr.rel (%p198) target = $region32
      $region31: #{gnn_layer.1} parent=23 // pred_region
        %s201 = smul.u32 16, %s19
        %p202 = scmp.lt.s32.totalorder %s17, 1
        %s203 = scalar_select %p202, %s17, 1
        %p204 = scmp.lt.s32.totalorder %s201, 15
        %s205 = scalar_select %p204, %s201, 15
        %s206 = smul.addr %s203, 16
        %s207 = sadd.s32 %s205, %s206
        %s208 = smul.addr %s207, 4
        %s209 = scalar_lea.vmem %s1, %s208
        %s210 = smul.u32 16, %s19
      $region32: #{gnn_layer.1} parent=23 // pred_fallthru
        _
    $region24: #{gnn_layer.1} parent=5 // pred_fallthru
      _
    %p211 = scmp.le.s32.totalorder 1, %s10
    %p212 = scmp.lt.s32.totalorder %s10, 3
    %p213 = pnand %p211, %p212
    %p214 = pneg %p213
    // Predicated region
    $region33: #{gnn_layer.1} parent=5 // pred_check
      _
    $region34: #{gnn_layer.1} parent=5 // pred_check_branch
      %216 = sbr.rel (%p213) target = $region36
    $region35: #{gnn_layer.1} parent=5 // pred_region
      %s217 = ssub.s32 %s10, 1
      %s218 = smul.u32 16, %s21
      %p219 = scmp.lt.s32.totalorder %s20, 1
      %s220 = scalar_select %p219, %s20, 1
      %p221 = scmp.lt.s32.totalorder %s218, 15
      %s222 = scalar_select %p221, %s218, 15
      %p223 = scmp.lt.s32.totalorder %s22, 0
      %s224 = scalar_select %p223, %s22, 0
      %s225 = sadd.s32 %s224, %s222
      %s226 = smul.addr %s220, 16
      %s227 = sadd.s32 %s225, %s226
      %s228 = smul.addr %s227, 4
      %s229 = scalar_lea.vmem %s0, %s228
      %p230 = pneg %p59
      %p231 = pneg %p56
      %s232 = smul.u32 16, %s22
      %p233 = scmp.lt.s32.totalorder %s20, 1
      %s234 = scalar_select %p233, %s20, 1
      %p235 = scmp.lt.s32.totalorder %s232, 15
      %s236 = scalar_select %p235, %s232, 15
      %s237 = smul.addr %s234, 16
      %s238 = sadd.s32 %s236, %s237
      %s239 = smul.addr %s238, 4
      %s240 = scalar_lea.vmem %s1, %s239
      %p241 = pneg %p87
      %p242 = pneg %p84
      %p243 = pneg %p108
      %p244 = pneg %p105
      %p245 = pneg %p129
      %p246 = pneg %p126
      %p247 = pneg %p157
      %p248 = pneg %p154
      %s249 = smul.u32 16, %s21
      %p250 = scmp.lt.s32.totalorder %s20, 1
      %s251 = scalar_select %p250, %s20, 1
      %p252 = scmp.lt.s32.totalorder %s249, 15
      %s253 = scalar_select %p252, %s249, 15
      %s254 = smul.addr %s251, 16
      %s255 = sadd.s32 %s253, %s254
      %s256 = smul.addr %s255, 8
      %s257 = scalar_lea.vmem %s4, %s256
      %s258 = smul.u32 16, %s21
      %p259 = scmp.lt.s32.totalorder %s20, 1
      %s260 = scalar_select %p259, %s20, 1
      %p261 = scmp.lt.s32.totalorder %s258, 15
      %s262 = scalar_select %p261, %s258, 15
      %p263 = scmp.lt.s32.totalorder %s22, 0
      %s264 = scalar_select %p263, %s22, 0
      %s265 = sadd.s32 %s264, %s262
      %s266 = smul.addr %s260, 16
      %s267 = sadd.s32 %s265, %s266
      %s268 = smul.addr %s267, 4
      %s269 = scalar_lea.vmem %s0, %s268
      %s270 = smul.u32 16, %s21
      %s271 = smul.u32 16, %s22
      %p272 = scmp.lt.s32.totalorder %s20, 1
      %s273 = scalar_select %p272, %s20, 1
      %p274 = scmp.lt.s32.totalorder %s271, 15
      %s275 = scalar_select %p274, %s271, 15
      %s276 = smul.addr %s273, 16
      %s277 = sadd.s32 %s275, %s276
      %s278 = smul.addr %s277, 4
      %s279 = scalar_lea.vmem %s1, %s278
      %s280 = smul.u32 16, %s22
      %s281 = smul.u32 16, %s21
      %p282 = scmp.lt.s32.totalorder %s20, 1
      %s283 = scalar_select %p282, %s20, 1
      %p284 = scmp.lt.s32.totalorder %s281, 15
      %s285 = scalar_select %p284, %s281, 15
      %s286 = smul.addr %s283, 16
      %s287 = sadd.s32 %s285, %s286
      %s288 = smul.addr %s287, 8
      %s289 = scalar_lea.vmem %s4, %s288
      %s290 = smul.u32 16, %s21
      %p291 = scmp.eq.s32.totalorder %s22, 0
      // Predicated region
      $region37: #{gnn_layer.1} parent=35 // pred_check
        %p292 = pneg %p291
      $region38: #{gnn_layer.1} parent=35 // pred_check_branch
        %294 = sbr.rel (%p292) target = $region40
      $region39: #{gnn_layer.1} parent=35 // pred_region
        %v295 = vld [vmem:[%s3] sm:$0x1]
        %v297 = vperm.slane %v295, 0
        %299 = vst [vmem:[%s289] sm:$0xff] %v297
        %300 = vst [vmem:[%s289 + $0x8] sm:$0xff] %v297
        %301 = vst [vmem:[%s289 + $0x10] sm:$0xff] %v297
        %302 = vst [vmem:[%s289 + $0x18] sm:$0xff] %v297
        %303 = vst [vmem:[%s289 + $0x20] sm:$0xff] %v297
        %304 = vst [vmem:[%s289 + $0x28] sm:$0xff] %v297
        %305 = vst [vmem:[%s289 + $0x30] sm:$0xff] %v297
        %306 = vst [vmem:[%s289 + $0x38] sm:$0xff] %v297
        %307 = vst [vmem:[%s289 + $0x40] sm:$0xff] %v297
        %308 = vst [vmem:[%s289 + $0x48] sm:$0xff] %v297
        %309 = vst [vmem:[%s289 + $0x50] sm:$0xff] %v297
        %310 = vst [vmem:[%s289 + $0x58] sm:$0xff] %v297
        %311 = vst [vmem:[%s289 + $0x60] sm:$0xff] %v297
        %312 = vst [vmem:[%s289 + $0x68] sm:$0xff] %v297
        %313 = vst [vmem:[%s289 + $0x70] sm:$0xff] %v297
        %314 = vst [vmem:[%s289 + $0x78] sm:$0xff] %v297
      $region40: #{gnn_layer.1} parent=35 // pred_fallthru
        _
      %v315 = vld [vmem:[%s279] sm:$0xf]
      %v316 = vld [vmem:[%s279 + $0x4] sm:$0xf]
      %v317 = vld [vmem:[%s279 + $0x8] sm:$0xf]
      %v318 = vld [vmem:[%s279 + $0xc] sm:$0xf]
      %v319 = vld [vmem:[%s279 + $0x10] sm:$0xf]
      %v320 = vld [vmem:[%s279 + $0x14] sm:$0xf]
      %v321 = vld [vmem:[%s279 + $0x18] sm:$0xf]
      %v322 = vld [vmem:[%s279 + $0x1c] sm:$0xf]
      %v323 = vld [vmem:[%s279 + $0x20] sm:$0xf]
      %v324 = vld [vmem:[%s279 + $0x24] sm:$0xf]
      %v325 = vld [vmem:[%s279 + $0x28] sm:$0xf]
      %v326 = vld [vmem:[%s279 + $0x2c] sm:$0xf]
      %v327 = vld [vmem:[%s279 + $0x30] sm:$0xf]
      %v328 = vld [vmem:[%s279 + $0x34] sm:$0xf]
      %v329 = vld [vmem:[%s279 + $0x38] sm:$0xf]
      %v330 = vld [vmem:[%s279 + $0x3c] sm:$0xf]
      %v331 = vld [vmem:[%s2] sm:$0xf]
      %v332 = vld [vmem:[%s2 + $0x4] sm:$0xf]
      %v333 = vld [vmem:[%s2 + $0x8] sm:$0xf]
      %v334 = vld [vmem:[%s2 + $0xc] sm:$0xf]
      %v335 = vld [vmem:[%s2 + $0x10] sm:$0xf]
      %v336 = vld [vmem:[%s2 + $0x14] sm:$0xf]
      %v337 = vld [vmem:[%s2 + $0x18] sm:$0xf]
      %v338 = vld [vmem:[%s2 + $0x1c] sm:$0xf]
      %v339 = vld [vmem:[%s2 + $0x20] sm:$0xf]
      %v340 = vld [vmem:[%s2 + $0x24] sm:$0xf]
      %v341 = vld [vmem:[%s2 + $0x28] sm:$0xf]
      %v342 = vld [vmem:[%s2 + $0x2c] sm:$0xf]
      %v343 = vld [vmem:[%s2 + $0x30] sm:$0xf]
      %v344 = vld [vmem:[%s2 + $0x34] sm:$0xf]
      %v345 = vld [vmem:[%s2 + $0x38] sm:$0xf]
      %v346 = vld [vmem:[%s2 + $0x3c] sm:$0xf]
      %v363 = vunpack.c.l.b16 %v315
      %v364 = vunpack.c.l.b16 %v316
      %v365 = vunpack.c.l.b16 %v317
      %v366 = vunpack.c.l.b16 %v318
      %v367 = vunpack.c.l.b16 %v319
      %v368 = vunpack.c.l.b16 %v320
      %v369 = vunpack.c.l.b16 %v321
      %v370 = vunpack.c.l.b16 %v322
      %v371 = vunpack.c.l.b16 %v323
      %v372 = vunpack.c.l.b16 %v324
      %v373 = vunpack.c.l.b16 %v325
      %v374 = vunpack.c.l.b16 %v326
      %v375 = vunpack.c.l.b16 %v327
      %v376 = vunpack.c.l.b16 %v328
      %v377 = vunpack.c.l.b16 %v329
      %v378 = vunpack.c.l.b16 %v330
      %v379 = vpack.c.b16 %v364, %v363
      %v380 = vpack.c.b16 %v366, %v365
      %v381 = vpack.c.b16 %v368, %v367
      %v382 = vpack.c.b16 %v370, %v369
      %v383 = vpack.c.b16 %v372, %v371
      %v384 = vpack.c.b16 %v374, %v373
      %v385 = vpack.c.b16 %v376, %v375
      %v386 = vpack.c.b16 %v378, %v377
      %v411 = vunpack.c.l.b16 %v331
      %v412 = vunpack.c.l.b16 %v332
      %v413 = vunpack.c.l.b16 %v333
      %v414 = vunpack.c.l.b16 %v334
      %v415 = vunpack.c.l.b16 %v335
      %v416 = vunpack.c.l.b16 %v336
      %v417 = vunpack.c.l.b16 %v337
      %v418 = vunpack.c.l.b16 %v338
      %v419 = vunpack.c.l.b16 %v339
      %v420 = vunpack.c.l.b16 %v340
      %v421 = vunpack.c.l.b16 %v341
      %v422 = vunpack.c.l.b16 %v342
      %v423 = vunpack.c.l.b16 %v343
      %v424 = vunpack.c.l.b16 %v344
      %v425 = vunpack.c.l.b16 %v345
      %v426 = vunpack.c.l.b16 %v346
      %v427 = vpack.c.b16 %v412, %v411
      %v428 = vpack.c.b16 %v414, %v413
      %v429 = vpack.c.b16 %v416, %v415
      %v430 = vpack.c.b16 %v418, %v417
      %v431 = vpack.c.b16 %v420, %v419
      %v432 = vpack.c.b16 %v422, %v421
      %v433 = vpack.c.b16 %v424, %v423
      %v434 = vpack.c.b16 %v426, %v425
      %443 = vmatpush.bf16.msra.mxu0 %v434
      %444 = vmatpush.bf16.msra.mxu0 %v433
      %445 = vmatpush.bf16.msra.mxu0 %v432
      %446 = vmatpush.bf16.msra.mxu0 %v431
      %447 = vmatpush.bf16.msra.mxu0 %v430
      %448 = vmatpush.bf16.msra.mxu0 %v429
      %449 = vmatpush.bf16.msra.mxu0 %v428
      %450 = vmatpush.bf16.msra.mxu0 %v427
      %451 = vmatmul.bf16.gmra.mxu0 %v379
      %v452 = vpop.f32.mrf.mxu0
      %v453 = vadd.f32 0.0, %v452
      %v454 = vpop.f32.mrf.mxu0
      %v455 = vadd.f32 0.0, %v454
      %456 = vmatmul.bf16.gmra.mxu0 %v380
      %v457 = vpop.f32.mrf.mxu0
      %v458 = vadd.f32 0.0, %v457
      %v459 = vpop.f32.mrf.mxu0
      %v460 = vadd.f32 0.0, %v459
      %461 = vmatmul.bf16.gmra.mxu0 %v381
      %v462 = vpop.f32.mrf.mxu0
      %v463 = vadd.f32 0.0, %v462
      %v464 = vpop.f32.mrf.mxu0
      %v465 = vadd.f32 0.0, %v464
      %466 = vmatmul.bf16.gmra.mxu0 %v382
      %v467 = vpop.f32.mrf.mxu0
      %v468 = vadd.f32 0.0, %v467
      %v469 = vpop.f32.mrf.mxu0
      %v470 = vadd.f32 0.0, %v469
      %471 = vmatmul.bf16.gmra.mxu0 %v383
      %v472 = vpop.f32.mrf.mxu0
      %v473 = vadd.f32 0.0, %v472
      %v474 = vpop.f32.mrf.mxu0
      %v475 = vadd.f32 0.0, %v474
      %476 = vmatmul.bf16.gmra.mxu0 %v384
      %v477 = vpop.f32.mrf.mxu0
      %v478 = vadd.f32 0.0, %v477
      %v479 = vpop.f32.mrf.mxu0
      %v480 = vadd.f32 0.0, %v479
      %481 = vmatmul.bf16.gmra.mxu0 %v385
      %v482 = vpop.f32.mrf.mxu0
      %v483 = vadd.f32 0.0, %v482
      %v484 = vpop.f32.mrf.mxu0
      %v485 = vadd.f32 0.0, %v484
      %486 = vmatmul.bf16.gmra.mxu0 %v386
      %v487 = vpop.f32.mrf.mxu0
      %v488 = vadd.f32 0.0, %v487
      %v489 = vpop.f32.mrf.mxu0
      %v490 = vadd.f32 0.0, %v489
      %491 = vdwg.mxu0
      %v492 = vpack.c.bf16 %v455, %v453
      %v493 = vpack.c.bf16 %v460, %v458
      %v494 = vpack.c.bf16 %v465, %v463
      %v495 = vpack.c.bf16 %v470, %v468
      %v496 = vpack.c.bf16 %v475, %v473
      %v497 = vpack.c.bf16 %v480, %v478
      %v498 = vpack.c.bf16 %v485, %v483
      %v499 = vpack.c.bf16 %v490, %v488
      %v500 = vld [vmem:[%s289] sm:$0xff]
      %v501 = vld [vmem:[%s289 + $0x8] sm:$0xff]
      %v502 = vld [vmem:[%s289 + $0x10] sm:$0xff]
      %v503 = vld [vmem:[%s289 + $0x18] sm:$0xff]
      %v504 = vld [vmem:[%s289 + $0x20] sm:$0xff]
      %v505 = vld [vmem:[%s289 + $0x28] sm:$0xff]
      %v506 = vld [vmem:[%s289 + $0x30] sm:$0xff]
      %v507 = vld [vmem:[%s289 + $0x38] sm:$0xff]
      %v508 = vld [vmem:[%s289 + $0x40] sm:$0xff]
      %v509 = vld [vmem:[%s289 + $0x48] sm:$0xff]
      %v510 = vld [vmem:[%s289 + $0x50] sm:$0xff]
      %v511 = vld [vmem:[%s289 + $0x58] sm:$0xff]
      %v512 = vld [vmem:[%s289 + $0x60] sm:$0xff]
      %v513 = vld [vmem:[%s289 + $0x68] sm:$0xff]
      %v514 = vld [vmem:[%s289 + $0x70] sm:$0xff]
      %v515 = vld [vmem:[%s289 + $0x78] sm:$0xff]
      %v516 = vld [vmem:[%s269] sm:$0xf]
      %v517 = vld [vmem:[%s269 + $0x4] sm:$0xf]
      %v518 = vld [vmem:[%s269 + $0x8] sm:$0xf]
      %v519 = vld [vmem:[%s269 + $0xc] sm:$0xf]
      %v520 = vld [vmem:[%s269 + $0x10] sm:$0xf]
      %v521 = vld [vmem:[%s269 + $0x14] sm:$0xf]
      %v522 = vld [vmem:[%s269 + $0x18] sm:$0xf]
      %v523 = vld [vmem:[%s269 + $0x1c] sm:$0xf]
      %v524 = vld [vmem:[%s269 + $0x20] sm:$0xf]
      %v525 = vld [vmem:[%s269 + $0x24] sm:$0xf]
      %v526 = vld [vmem:[%s269 + $0x28] sm:$0xf]
      %v527 = vld [vmem:[%s269 + $0x2c] sm:$0xf]
      %v528 = vld [vmem:[%s269 + $0x30] sm:$0xf]
      %v529 = vld [vmem:[%s269 + $0x34] sm:$0xf]
      %v530 = vld [vmem:[%s269 + $0x38] sm:$0xf]
      %v531 = vld [vmem:[%s269 + $0x3c] sm:$0xf]
      %v548 = vunpack.c.l.b16 %v516
      %v549 = vunpack.c.l.b16 %v517
      %v550 = vunpack.c.l.b16 %v518
      %v551 = vunpack.c.l.b16 %v519
      %v552 = vunpack.c.l.b16 %v520
      %v553 = vunpack.c.l.b16 %v521
      %v554 = vunpack.c.l.b16 %v522
      %v555 = vunpack.c.l.b16 %v523
      %v556 = vunpack.c.l.b16 %v524
      %v557 = vunpack.c.l.b16 %v525
      %v558 = vunpack.c.l.b16 %v526
      %v559 = vunpack.c.l.b16 %v527
      %v560 = vunpack.c.l.b16 %v528
      %v561 = vunpack.c.l.b16 %v529
      %v562 = vunpack.c.l.b16 %v530
      %v563 = vunpack.c.l.b16 %v531
      %v564 = vpack.c.b16 %v549, %v548
      %v565 = vpack.c.b16 %v551, %v550
      %v566 = vpack.c.b16 %v553, %v552
      %v567 = vpack.c.b16 %v555, %v554
      %v568 = vpack.c.b16 %v557, %v556
      %v569 = vpack.c.b16 %v559, %v558
      %v570 = vpack.c.b16 %v561, %v560
      %v571 = vpack.c.b16 %v563, %v562
      %580 = vmatpush.bf16.msra.mxu0 %v499
      %581 = vmatpush.bf16.msra.mxu0 %v498
      %582 = vmatpush.bf16.msra.mxu0 %v497
      %583 = vmatpush.bf16.msra.mxu0 %v496
      %584 = vmatpush.bf16.msra.mxu0 %v495
      %585 = vmatpush.bf16.msra.mxu0 %v494
      %586 = vmatpush.bf16.msra.mxu0 %v493
      %587 = vmatpush.bf16.msra.mxu0 %v492
      %588 = vmatmul.bf16.gmra.mxu0 %v564
      %v589 = vpop.f32.mrf.mxu0
      %v590 = vadd.f32 0.0, %v589
      %v591 = vpop.f32.mrf.mxu0
      %v592 = vadd.f32 0.0, %v591
      %593 = vmatmul.bf16.gmra.mxu0 %v565
      %v594 = vpop.f32.mrf.mxu0
      %v595 = vadd.f32 0.0, %v594
      %v596 = vpop.f32.mrf.mxu0
      %v597 = vadd.f32 0.0, %v596
      %598 = vmatmul.bf16.gmra.mxu0 %v566
      %v599 = vpop.f32.mrf.mxu0
      %v600 = vadd.f32 0.0, %v599
      %v601 = vpop.f32.mrf.mxu0
      %v602 = vadd.f32 0.0, %v601
      %603 = vmatmul.bf16.gmra.mxu0 %v567
      %v604 = vpop.f32.mrf.mxu0
      %v605 = vadd.f32 0.0, %v604
      %v606 = vpop.f32.mrf.mxu0
      %v607 = vadd.f32 0.0, %v606
      %608 = vmatmul.bf16.gmra.mxu0 %v568
      %v609 = vpop.f32.mrf.mxu0
      %v610 = vadd.f32 0.0, %v609
      %v611 = vpop.f32.mrf.mxu0
      %v612 = vadd.f32 0.0, %v611
      %613 = vmatmul.bf16.gmra.mxu0 %v569
      %v614 = vpop.f32.mrf.mxu0
      %v615 = vadd.f32 0.0, %v614
      %v616 = vpop.f32.mrf.mxu0
      %v617 = vadd.f32 0.0, %v616
      %618 = vmatmul.bf16.gmra.mxu0 %v570
      %v619 = vpop.f32.mrf.mxu0
      %v620 = vadd.f32 0.0, %v619
      %v621 = vpop.f32.mrf.mxu0
      %v622 = vadd.f32 0.0, %v621
      %623 = vmatmul.bf16.gmra.mxu0 %v571
      %v624 = vpop.f32.mrf.mxu0
      %v625 = vadd.f32 0.0, %v624
      %v626 = vpop.f32.mrf.mxu0
      %v627 = vadd.f32 0.0, %v626
      %628 = vdwg.mxu0
      %v629 = vadd.f32 %v500, %v590
      %v630 = vadd.f32 %v501, %v592
      %v631 = vadd.f32 %v502, %v595
      %v632 = vadd.f32 %v503, %v597
      %v633 = vadd.f32 %v504, %v600
      %v634 = vadd.f32 %v505, %v602
      %v635 = vadd.f32 %v506, %v605
      %v636 = vadd.f32 %v507, %v607
      %v637 = vadd.f32 %v508, %v610
      %v638 = vadd.f32 %v509, %v612
      %v639 = vadd.f32 %v510, %v615
      %v640 = vadd.f32 %v511, %v617
      %v641 = vadd.f32 %v512, %v620
      %v642 = vadd.f32 %v513, %v622
      %v643 = vadd.f32 %v514, %v625
      %v644 = vadd.f32 %v515, %v627
      %645 = vst [vmem:[%s289] sm:$0xff] %v629
      %646 = vst [vmem:[%s289 + $0x8] sm:$0xff] %v630
      %647 = vst [vmem:[%s289 + $0x10] sm:$0xff] %v631
      %648 = vst [vmem:[%s289 + $0x18] sm:$0xff] %v632
      %649 = vst [vmem:[%s289 + $0x20] sm:$0xff] %v633
      %650 = vst [vmem:[%s289 + $0x28] sm:$0xff] %v634
      %651 = vst [vmem:[%s289 + $0x30] sm:$0xff] %v635
      %652 = vst [vmem:[%s289 + $0x38] sm:$0xff] %v636
      %653 = vst [vmem:[%s289 + $0x40] sm:$0xff] %v637
      %654 = vst [vmem:[%s289 + $0x48] sm:$0xff] %v638
      %655 = vst [vmem:[%s289 + $0x50] sm:$0xff] %v639
      %656 = vst [vmem:[%s289 + $0x58] sm:$0xff] %v640
      %657 = vst [vmem:[%s289 + $0x60] sm:$0xff] %v641
      %658 = vst [vmem:[%s289 + $0x68] sm:$0xff] %v642
      %659 = vst [vmem:[%s289 + $0x70] sm:$0xff] %v643
      %660 = vst [vmem:[%s289 + $0x78] sm:$0xff] %v644
      %s661 = smul.u32 16, %s21
      %p662 = scmp.lt.s32.totalorder %s20, 1
      %s663 = scalar_select %p662, %s20, 1
      %p664 = scmp.lt.s32.totalorder %s661, 15
      %s665 = scalar_select %p664, %s661, 15
      %s666 = smul.addr %s663, 16
      %s667 = sadd.s32 %s665, %s666
      %s668 = smul.addr %s667, 8
      %s669 = scalar_lea.vmem %s4, %s668
      // Predicated region
      $region41: #{gnn_layer.1} parent=35 // pred_check
        %p670 = pneg %p154
      $region42: #{gnn_layer.1} parent=35 // pred_check_branch
        %672 = sbr.rel (%p670) target = $region44
      $region43: #{gnn_layer.1} parent=35 // pred_region
        %s673 = smul.u32 16, %s21
      $region44: #{gnn_layer.1} parent=35 // pred_fallthru
        _
    $region36: #{gnn_layer.1} parent=5 // pred_fallthru
      _
    %p674 = scmp.le.s32.totalorder 2, %s10
    // Predicated region
    $region45: #{gnn_layer.1} parent=5 // pred_check
      %p675 = pneg %p674
    $region46: #{gnn_layer.1} parent=5 // pred_check_branch
      %677 = sbr.rel (%p675) target = $region48
    $region47: #{gnn_layer.1} parent=5 // pred_region
      %s678 = ssub.s32 %s10, 2
      // Predicated region
      $region49: #{gnn_layer.1} parent=47 // pred_check
        %p679 = pneg %p160
      $region50: #{gnn_layer.1} parent=47 // pred_check_branch
        %681 = sbr.rel (%p679) target = $region52
      $region51: #{gnn_layer.1} parent=47 // pred_region
        %s682 = smul.u32 16, %s24
        %p683 = scmp.lt.s32.totalorder %s23, 1
        %s684 = scalar_select %p683, %s23, 1
        %p685 = scmp.lt.s32.totalorder %s682, 15
        %s686 = scalar_select %p685, %s682, 15
        %s687 = smul.addr %s684, 16
        %s688 = sadd.s32 %s686, %s687
        %s689 = smul.addr %s688, 8
        %s690 = scalar_lea.vmem %s4, %s689
      $region52: #{gnn_layer.1} parent=47 // pred_fallthru
        _
    $region48: #{gnn_layer.1} parent=5 // pred_fallthru
      _
  $region6: #{gnn_layer.1} parent=0 // loop_footer
    %s14 = sadd.s32 1, %s10
  $region7: #{gnn_layer.1} parent=0 // loop_footer_branch
    %9 = sbr.rel target = $region3
  $region8: #{gnn_layer.1} parent=0 // loop_exit
    _

</llo_original>
